<compile_context>
chip_gen: v7x
topology: tpu7x:2x2x1
jax: 0.10.0
libtpu: 0.0.40
codegen_flags: <defaults>
</compile_context>

<pallas_src>
import numpy as np

import jax
import jax.numpy as jnp
from jax import lax
from jax.experimental import pallas as pl
from jax.experimental.pallas import tpu as pltpu

_LANE = 128


def _round_up(x, m):
    return ((x + m - 1) // m) * m


# ----------------------------------------------------------------------------
# Pallas kernel: fused bottleneck matmul + residual + BN shift + ReLU
# ----------------------------------------------------------------------------
def _matmul_residual_relu_kernel(x_ref, w_ref, r_ref, s_ref, o_ref):
    # x: (TM, K) bf16   w: (K, Np) bf16   r: (TM, Np) bf16   s: (1, Np) f32
    y = jnp.dot(x_ref[...], w_ref[...], preferred_element_type=jnp.float32)
    y = y + r_ref[...].astype(jnp.float32) + s_ref[...]
    o_ref[...] = jnp.maximum(y, 0.0).astype(o_ref.dtype)


def bottleneck_matmul_residual_relu(x_rows, w_kn, r_rows, shift,
                                    *, tile_m=512, min_m_blocks=2):
    """relu(x_rows @ w_kn + r_rows + shift); bf16 in / bf16 out, f32 accumulate.

    x_rows (M, K) bf16, w_kn (K, Np) bf16 (BN scale folded, Np % 128 == 0),
    r_rows (M, Np) bf16, shift (Np,) f32.  Tiled on M only; the grid axis is
    'parallel'.  TM is a multiple of 16 (bf16 sublane pack) and capped so the
    grid has >= `min_m_blocks` steps when M allows (v7x megacore).
    """
    m, k = x_rows.shape
    n_pad = w_kn.shape[1]
    assert n_pad % _LANE == 0 and r_rows.shape == (m, n_pad)

    tm = min(tile_m,
             _round_up(pl.cdiv(m, min_m_blocks), 16),
             _round_up(m, 16))
    grid = (pl.cdiv(m, tm),)

    return pl.pallas_call(
        _matmul_residual_relu_kernel,
        out_shape=jax.ShapeDtypeStruct((m, n_pad), jnp.bfloat16),
        grid=grid,
        in_specs=[
            pl.BlockSpec((tm, k), lambda i: (i, 0)),
            # Constant-index weight block (never re-fetched across steps).
            # TODO(synk): pipeline_mode=pl.Buffered(1) would halve resident
            # weight VMEM; left at default buffering for lowering portability.
            pl.BlockSpec((k, n_pad), lambda i: (0, 0)),
            pl.BlockSpec((tm, n_pad), lambda i: (i, 0)),
            pl.BlockSpec((1, n_pad), lambda i: (0, 0)),
        ],
        out_specs=pl.BlockSpec((tm, n_pad), lambda i: (i, 0)),
        compiler_params=pltpu.CompilerParams(
            dimension_semantics=("parallel",),
            vmem_limit_bytes=48 * 1024 * 1024),
    )(x_rows, w_kn, r_rows, shift.reshape(1, n_pad).astype(jnp.float32))


def bn_fold(w_oi, gamma, beta, mean, var, bias=None, eps=1e-5):
    """Fold conv bias + eval-mode BN into (scaled weight (K, N), shift (N,))."""
    scale = gamma / jnp.sqrt(var + eps)                       # (C_out,)
    w_kn = w_oi.T.astype(jnp.float32) * scale[None, :]        # (C_in, C_out)
    shift = beta - mean * scale
    if bias is not None:
        shift = shift + bias * scale
    return w_kn, shift


# ----------------------------------------------------------------------------
# Plain-JAX glue for the tiny bin-resolution path (NHWC)
# ----------------------------------------------------------------------------
def adaptive_avg_pool_nhwc(x, out_size):
    """Exact PyTorch AdaptiveAvgPool2d via two pooling-matrix einsums."""
    _, h, w, _ = x.shape

    def pool_matrix(in_dim, out_dim):
        m = np.zeros((out_dim, in_dim), np.float32)
        for i in range(out_dim):
            s = (i * in_dim) // out_dim
            e = -((-(i + 1) * in_dim) // out_dim)
            m[i, s:e] = 1.0 / (e - s)
        return jnp.asarray(m)

    a_h = pool_matrix(h, out_size)
    a_w = pool_matrix(w, out_size)
    y = jnp.einsum("bh,nhwc->nbwc", a_h, x)
    y = jnp.einsum("gw,nbwc->nbgc", a_w, y)
    return y                                                   # (N, b, b, C)


def _interp_matrix(out_dim, in_dim):
    """Bilinear (align_corners=True) 1-D interpolation matrix (out, in)."""
    m = np.zeros((out_dim, in_dim), np.float32)
    if in_dim == 1:
        m[:, 0] = 1.0
        return jnp.asarray(m)
    if out_dim == 1:
        m[0, 0] = 1.0
        return jnp.asarray(m)
    scale = (in_dim - 1) / (out_dim - 1)
    for i in range(out_dim):
        p = i * scale
        j0 = int(np.floor(p))
        j1 = min(j0 + 1, in_dim - 1)
        wgt = p - j0
        m[i, j0] += 1.0 - wgt
        m[i, j1] += wgt
    return jnp.asarray(m)


def channel_attention_nhwc(x, w1, w2):
    """CBAM channel attention; w1: (C//r, C), w2: (C, C//r), bias-free."""
    avg = jnp.mean(x, axis=(1, 2))                             # (N, C)
    mx = jnp.max(x, axis=(1, 2))                               # (N, C)

    def fc(v):
        return jnp.maximum(v @ w1.T, 0.0) @ w2.T

    att = jax.nn.sigmoid(fc(avg) + fc(mx))                     # (N, C)
    return x * att[:, None, None, :]


def spatial_attention_nhwc(x, w_conv_oihw):
    """CBAM spatial attention; w_conv: (1, 2, 7, 7) OIHW, bias-free."""
    avg = jnp.mean(x, axis=-1, keepdims=True)
    mx = jnp.max(x, axis=-1, keepdims=True)
    cat = jnp.concatenate([avg, mx], axis=-1)                  # (N, h, w, 2)
    w_hwio = jnp.transpose(w_conv_oihw, (2, 3, 1, 0))          # (7, 7, 2, 1)
    conv = lax.conv_general_dilated(
        cat, w_hwio, window_strides=(1, 1), padding=((3, 3), (3, 3)),
        dimension_numbers=("NHWC", "HWIO", "NHWC"))
    return x * jax.nn.sigmoid(conv)


# ----------------------------------------------------------------------------
# _PSPModule forward (NCHW interface, NHWC internals)
# ----------------------------------------------------------------------------
def psp_module_forward(features, params, bin_sizes):
    n, c_in, h, w = features.shape
    c_out = params["stages"][0]["conv_w"].shape[0]
    n_pad = max(_LANE, _round_up(c_out, _LANE))

    x_nhwc = jnp.transpose(features, (0, 2, 3, 1))             # (N,H,W,C_in) f32
    x_rows = x_nhwc.astype(jnp.bfloat16).reshape(n * h * w, c_in)

    # --- fold bottleneck conv + BN; split by input-channel block, pad lanes ---
    bp = params["bottleneck"]
    wb_kn, shift_b = bn_fold(bp["conv_w"], bp["bn_gamma"], bp["bn_beta"],
                             bp["bn_mean"], bp["bn_var"], bias=bp["conv_b"])
    wb_kn = jnp.pad(wb_kn, ((0, 0), (0, n_pad - c_out)))       # (C_cat, n_pad)
    shift_b = jnp.pad(shift_b, (0, n_pad - c_out))             # (n_pad,)
    wx_kn = wb_kn[:c_in]                                       # x's weight block

    # --- per-stage path at bin resolution (tiny -> plain XLA, f32) ---
    # The 1x1 bottleneck conv commutes with bilinear upsampling, so project each
    # stage to c_out at bin resolution, upsample the projected result, and
    # accumulate: no full-resolution pyramids, no concat, bottleneck K = C_in.
    residual = jnp.zeros((n, h, w, n_pad), jnp.float32)
    for s, b_s in enumerate(bin_sizes):
        sp = params["stages"][s]
        pooled = adaptive_avg_pool_nhwc(x_nhwc, b_s)           # (N,b,b,C_in)
        w_s, sh_s = bn_fold(sp["conv_w"], sp["bn_gamma"], sp["bn_beta"],
                            sp["bn_mean"], sp["bn_var"])
        y = jnp.maximum(pooled @ w_s + sh_s, 0.0)              # (N,b,b,c_out)
        y = channel_attention_nhwc(y, sp["ca_w1"], sp["ca_w2"])
        y = spatial_attention_nhwc(y, sp["sa_w"])
        wbs = wb_kn[c_in + s * c_out: c_in + (s + 1) * c_out]  # (c_out, n_pad)
        z = y @ wbs                                            # (N,b,b,n_pad)
        a_h = _interp_matrix(h, b_s)
        a_w = _interp_matrix(w, b_s)
        z = jnp.einsum("hb,nbgc->nhgc", a_h, z)
        z = jnp.einsum("wg,nhgc->nhwc", a_w, z)
        residual = residual + z

    r_rows = residual.astype(jnp.bfloat16).reshape(n * h * w, n_pad)

    # --- the single full-resolution Pallas kernel ---
    out_rows = bottleneck_matmul_residual_relu(
        x_rows, wx_kn.astype(jnp.bfloat16), r_rows, shift_b)

    # Keep the lane-padded layout until the single final slice + transpose.
    out = out_rows.reshape(n, h, w, n_pad)[..., :c_out]
    # TODO(synk): nn.Dropout2d(0.1) is identity in eval mode; no RNG mask applied.
    return jnp.transpose(out, (0, 3, 1, 2)).astype(jnp.float32)   # NCHW f32


# ----------------------------------------------------------------------------
# Deterministic parameter init (mirrors the PyTorch module's shapes)
# ----------------------------------------------------------------------------
def init_params(key, in_channels, bin_sizes, reduction=16):
    out_channels = in_channels // len(bin_sizes)
    stages = []
    for s, _ in enumerate(bin_sizes):
        ks = jax.random.split(jax.random.fold_in(key, s), 8)
        stages.append(dict(
            conv_w=0.1 * jax.random.normal(ks[0], (out_channels, in_channels), jnp.float32),
            bn_gamma=1.0 + 0.1 * jax.random.normal(ks[1], (out_channels,), jnp.float32),
            bn_beta=0.1 * jax.random.normal(ks[2], (out_channels,), jnp.float32),
            bn_mean=0.1 * jax.random.normal(ks[3], (out_channels,), jnp.float32),
            bn_var=jax.random.uniform(ks[4], (out_channels,), jnp.float32, 0.5, 1.5),
            ca_w1=0.1 * jax.random.normal(ks[5], (max(1, out_channels // reduction), out_channels), jnp.float32),
            ca_w2=0.1 * jax.random.normal(ks[6], (out_channels, max(1, out_channels // reduction)), jnp.float32),
            sa_w=0.1 * jax.random.normal(ks[7], (1, 2, 7, 7), jnp.float32),
        ))
    kb = jax.random.split(jax.random.fold_in(key, 1000), 6)
    c_cat = in_channels + out_channels * len(bin_sizes)
    bottleneck = dict(
        conv_w=0.05 * jax.random.normal(kb[0], (out_channels, c_cat), jnp.float32),
        conv_b=0.05 * jax.random.normal(kb[1], (out_channels,), jnp.float32),
        bn_gamma=1.0 + 0.1 * jax.random.normal(kb[2], (out_channels,), jnp.float32),
        bn_beta=0.1 * jax.random.normal(kb[3], (out_channels,), jnp.float32),
        bn_mean=0.1 * jax.random.normal(kb[4], (out_channels,), jnp.float32),
        bn_var=jax.random.uniform(kb[5], (out_channels,), jnp.float32, 0.5, 1.5),
    )
    return dict(stages=stages, bottleneck=bottleneck)


if __name__ == "__main__":
    key = jax.random.PRNGKey(0)
    in_channels = 64
    bin_sizes = [1, 2, 3, 6]
    batch, height, width = 2, 16, 16

    x = jax.random.normal(jax.random.fold_in(key, 7),
                          (batch, in_channels, height, width), jnp.float32)
    params = init_params(jax.random.fold_in(key, 13), in_channels, bin_sizes)

    fwd = jax.jit(lambda f: psp_module_forward(f, params, bin_sizes))
    out = jax.block_until_ready(fwd(x))

    out_channels = in_channels // len(bin_sizes)
    assert out.shape == (batch, out_channels, height, width), out.shape
    assert bool(jnp.all(jnp.isfinite(out)))
    print("KERNEL_OK")
</pallas_src>

<mosaic_0001>
module attributes {stable_mosaic.version = 11 : i64} {
  func.func @_matmul_residual_relu_kernel(%arg0: i32, %arg1: memref<256x64xbf16, #tpu.memory_space<vmem>>, %arg2: memref<64x128xbf16, #tpu.memory_space<vmem>>, %arg3: memref<256x128xbf16, #tpu.memory_space<vmem>>, %arg4: memref<1x128xf32, #tpu.memory_space<vmem>>, %arg5: memref<256x128xbf16, #tpu.memory_space<vmem>>) attributes {dimension_semantics = [#tpu.dimension_semantics<parallel>], iteration_bounds = array<i64: 2>, scalar_prefetch = 0 : i64, scratch_operands = 0 : i64, tpu.core_type = #tpu.core_type<tc>, window_params = [{transform_indices = @transform_0, window_bounds = array<i64: 256, 64>}, {pipeline_mode = #tpu.pipeline_mode<synchronous>, transform_indices = @transform_1, window_bounds = array<i64: 64, 128>}, {transform_indices = @transform_2, window_bounds = array<i64: 256, 128>}, {pipeline_mode = #tpu.pipeline_mode<synchronous>, transform_indices = @transform_3, window_bounds = array<i64: 1, 128>}, {transform_indices = @transform_4, window_bounds = array<i64: 256, 128>}]} {
    %c0 = arith.constant 0 : index
    %c0_0 = arith.constant 0 : index
    %0 = vector.load %arg1[%c0, %c0_0] : memref<256x64xbf16, #tpu.memory_space<vmem>>, vector<256x64xbf16>
    %c0_1 = arith.constant 0 : index
    %c0_2 = arith.constant 0 : index
    %1 = vector.load %arg2[%c0_1, %c0_2] : memref<64x128xbf16, #tpu.memory_space<vmem>>, vector<64x128xbf16>
    %cst = arith.constant dense<0.000000e+00> : vector<256x128xf32>
    %2 = tpu.matmul %0, %1, %cst {dimension_numbers = #tpu.dot_dimension_numbers<[1], [0], [0], [1], [0, 0, 1, 1], [], []>} : vector<256x64xbf16>, vector<64x128xbf16>, vector<256x128xf32> -> vector<256x128xf32>
    %c0_3 = arith.constant 0 : index
    %c0_4 = arith.constant 0 : index
    %3 = vector.load %arg3[%c0_3, %c0_4] : memref<256x128xbf16, #tpu.memory_space<vmem>>, vector<256x128xbf16>
    %4 = arith.extf %3 : vector<256x128xbf16> to vector<256x128xf32>
    %5 = arith.addf %2, %4 : vector<256x128xf32>
    %c0_5 = arith.constant 0 : index
    %c0_6 = arith.constant 0 : index
    %6 = vector.load %arg4[%c0_5, %c0_6] : memref<1x128xf32, #tpu.memory_space<vmem>>, vector<1x128xf32>
    %7 = vector.broadcast %6 : vector<1x128xf32> to vector<256x128xf32>
    %8 = arith.addf %5, %7 : vector<256x128xf32>
    %cst_7 = arith.constant 0.000000e+00 : f32
    %9 = vector.broadcast %cst_7 : f32 to vector<256x128xf32>
    %10 = arith.maximumf %8, %9 : vector<256x128xf32>
    %11 = arith.truncf %10 : vector<256x128xf32> to vector<256x128xbf16>
    %c0_8 = arith.constant 0 : index
    %c0_9 = arith.constant 0 : index
    %12 = vector.load %arg5[%c0_8, %c0_9] : memref<256x128xbf16, #tpu.memory_space<vmem>>, vector<256x128xbf16>
    tpu.vector_store %arg5[%c0_8, %c0_9], %11 {strides = array<i32>} : memref<256x128xbf16, #tpu.memory_space<vmem>>, vector<256x128xbf16>,
    return
  }
  func.func @transform_0(%arg0: i32) -> (i32, i32) {
    %c0_i32 = arith.constant 0 : i32
    %c0_i32_0 = arith.constant 0 : i32
    return %arg0, %c0_i32 : i32, i32
  }
  func.func @transform_1(%arg0: i32) -> (i32, i32) {
    %c0_i32 = arith.constant 0 : i32
    %c0_i32_0 = arith.constant 0 : i32
    %c0_i32_1 = arith.constant 0 : i32
    return %c0_i32, %c0_i32_0 : i32, i32
  }
  func.func @transform_2(%arg0: i32) -> (i32, i32) {
    %c0_i32 = arith.constant 0 : i32
    %c0_i32_0 = arith.constant 0 : i32
    return %arg0, %c0_i32 : i32, i32
  }
  func.func @transform_3(%arg0: i32) -> (i32, i32) {
    %c0_i32 = arith.constant 0 : i32
    %c0_i32_0 = arith.constant 0 : i32
    %c0_i32_1 = arith.constant 0 : i32
    return %c0_i32, %c0_i32_0 : i32, i32
  }
  func.func @transform_4(%arg0: i32) -> (i32, i32) {
    %c0_i32 = arith.constant 0 : i32
    %c0_i32_0 = arith.constant 0 : i32
    return %arg0, %c0_i32 : i32, i32
  }
}

</mosaic_0001>

<llo_original>
// kernel: _lambda_.1
$region0: #{_lambda_.1}
  #allocation0 [shape = 'u32[]', space=smem, size = 0x4, offset = 0x4, fixed_abs, tag = 'smem constant byte address 0x4 - core index']
  #allocation1 [shape = 'u32[144,128]{1,0:T(1,128)}', space=vmem, size = 0x12000, scoped, tag = 'internal scratch']
  %s0 = inlined_call_operand.vmem [shape: bf16[512,64], index: 0, kind: input, shape index: {}]
  %s1 = inlined_call_operand.vmem [shape: bf16[64,128], index: 1, kind: input, shape index: {}]
  %s2 = inlined_call_operand.vmem [shape: bf16[512,128], index: 2, kind: input, shape index: {}]
  %s3 = inlined_call_operand.vmem [shape: f32[1,128], index: 3, kind: input, shape index: {}]
  %s4 = inlined_call_operand.vmem [shape: bf16[512,128], index: 4, kind: output, shape index: {}]
  %s5 = sld [smem:[#allocation0]]
  $region49: #{_lambda_.1} parent=0
    _
  %s7 = ssub.s32 1, %s5
  %s8 = scalar_select 0, %s7, %s5
  loop: start=0, step=1, limit=4
  $region2: #{_lambda_.1} parent=0 // loop_pre_header
    _
  $region3: #{_lambda_.1} parent=0 // loop_header
    %s10 = sphi 0, %s14
    %p11 = scmp.ge.s32.totalorder %s10, 4
    %s20 = sphi 0, %s22
    %s23 = sphi 0, %s20
    %s24 = sphi 0, %s23
    %s40 = sphi 0, %s24
    %s44 = sphi 0, %s44
    %s46 = sphi 0, %s44
    %s47 = sphi 0, %s46
    %s61 = sphi 0, %s47
    %s67 = sphi 0, %s69
    %s70 = sphi 0, %s67
    %s71 = sphi 0, %s70
    %s87 = sphi 0, %s71
    %s91 = sphi 0, %s91
    %s93 = sphi 0, %s91
    %s94 = sphi 0, %s93
    %s108 = sphi 0, %s94
    %s114 = sphi 0, %s116
    %s117 = sphi 0, %s114
    %s118 = sphi 0, %s117
    %s134 = sphi 0, %s118
  $region4: #{_lambda_.1} parent=0 // loop_header_branch
    %13 = sbr.rel (%p11) target = $region8
  $region5: #{_lambda_.1} parent=0 // loop_body
    %s15 = ssub.s32 %s10, 1
    %s16 = ssub.s32 %s10, 2
    %s17 = sadd.s32 %s10, 1
    %s18 = ssub.s32 %s10, %s17
    %p19 = scmp.eq.s32.totalorder %s18, 0
    %s21 = sadd.s32 %s20, 1
    %s22 = scalar_select %p19, %s20, %s21
    %p25 = pneg %p19
    %p26 = scmp.eq.s32.totalorder %s10, 1
    %p27 = por %p25, %p26
    %p28 = scmp.ne.s32.totalorder %s20, %s23
    %p29 = scmp.eq.s32.totalorder %s10, 0
    %p30 = por %p28, %p29
    %p31 = scmp.ne.s32.totalorder %s20, %s23
    %p32 = scmp.eq.s32.totalorder %s15, 1
    %p33 = por %p31, %p32
    %p34 = scmp.ne.s32.totalorder %s23, %s24
    %p35 = scmp.eq.s32.totalorder %s15, 0
    %p36 = por %p34, %p35
    %p37 = scmp.ne.s32.totalorder %s23, %s24
    %p38 = scmp.eq.s32.totalorder %s16, 1
    %p39 = por %p37, %p38
    %p41 = scmp.ne.s32.totalorder %s24, %s40
    %p42 = scmp.eq.s32.totalorder %s16, 0
    %p43 = por %p41, %p42
    %s45 = sadd.s32 %s44, 1
    %p48 = scmp.eq.s32.totalorder %s10, 1
    %p49 = scmp.ne.s32.totalorder %s44, %s46
    %p50 = scmp.eq.s32.totalorder %s10, 0
    %p51 = por %p49, %p50
    %p52 = scmp.ne.s32.totalorder %s44, %s46
    %p53 = scmp.eq.s32.totalorder %s15, 1
    %p54 = por %p52, %p53
    %p55 = scmp.ne.s32.totalorder %s46, %s47
    %p56 = scmp.eq.s32.totalorder %s15, 0
    %p57 = por %p55, %p56
    %p58 = scmp.ne.s32.totalorder %s46, %s47
    %p59 = scmp.eq.s32.totalorder %s16, 1
    %p60 = por %p58, %p59
    %p62 = scmp.ne.s32.totalorder %s47, %s61
    %p63 = scmp.eq.s32.totalorder %s16, 0
    %p64 = por %p62, %p63
    %s65 = ssub.s32 %s10, %s17
    %p66 = scmp.eq.s32.totalorder %s65, 0
    %s68 = sadd.s32 %s67, 1
    %s69 = scalar_select %p66, %s67, %s68
    %p72 = pneg %p66
    %p73 = scmp.eq.s32.totalorder %s10, 1
    %p74 = por %p72, %p73
    %p75 = scmp.ne.s32.totalorder %s67, %s70
    %p76 = scmp.eq.s32.totalorder %s10, 0
    %p77 = por %p75, %p76
    %p78 = scmp.ne.s32.totalorder %s67, %s70
    %p79 = scmp.eq.s32.totalorder %s15, 1
    %p80 = por %p78, %p79
    %p81 = scmp.ne.s32.totalorder %s70, %s71
    %p82 = scmp.eq.s32.totalorder %s15, 0
    %p83 = por %p81, %p82
    %p84 = scmp.ne.s32.totalorder %s70, %s71
    %p85 = scmp.eq.s32.totalorder %s16, 1
    %p86 = por %p84, %p85
    %p88 = scmp.ne.s32.totalorder %s71, %s87
    %p89 = scmp.eq.s32.totalorder %s16, 0
    %p90 = por %p88, %p89
    %s92 = sadd.s32 %s91, 1
    %p95 = scmp.eq.s32.totalorder %s10, 1
    %p96 = scmp.ne.s32.totalorder %s91, %s93
    %p97 = scmp.eq.s32.totalorder %s10, 0
    %p98 = por %p96, %p97
    %p99 = scmp.ne.s32.totalorder %s91, %s93
    %p100 = scmp.eq.s32.totalorder %s15, 1
    %p101 = por %p99, %p100
    %p102 = scmp.ne.s32.totalorder %s93, %s94
    %p103 = scmp.eq.s32.totalorder %s15, 0
    %p104 = por %p102, %p103
    %p105 = scmp.ne.s32.totalorder %s93, %s94
    %p106 = scmp.eq.s32.totalorder %s16, 1
    %p107 = por %p105, %p106
    %p109 = scmp.ne.s32.totalorder %s94, %s108
    %p110 = scmp.eq.s32.totalorder %s16, 0
    %p111 = por %p109, %p110
    %s112 = ssub.s32 %s10, %s17
    %p113 = scmp.eq.s32.totalorder %s112, 0
    %s115 = sadd.s32 %s114, 1
    %s116 = scalar_select %p113, %s114, %s115
    %p119 = pneg %p113
    %p120 = scmp.eq.s32.totalorder %s10, 1
    %p121 = por %p119, %p120
    %p122 = scmp.ne.s32.totalorder %s114, %s117
    %p123 = scmp.eq.s32.totalorder %s10, 0
    %p124 = por %p122, %p123
    %p125 = scmp.ne.s32.totalorder %s114, %s117
    %p126 = scmp.eq.s32.totalorder %s15, 1
    %p127 = por %p125, %p126
    %p128 = scmp.ne.s32.totalorder %s117, %s118
    %p129 = scmp.eq.s32.totalorder %s15, 0
    %p130 = por %p128, %p129
    %p131 = scmp.ne.s32.totalorder %s117, %s118
    %p132 = scmp.eq.s32.totalorder %s16, 1
    %p133 = por %p131, %p132
    %p135 = scmp.ne.s32.totalorder %s118, %s134
    %p136 = scmp.eq.s32.totalorder %s16, 0
    %p137 = por %p135, %p136
    %p138 = scmp.le.s32.totalorder 1, %s10
    %p139 = scmp.lt.s32.totalorder %s10, 3
    %p140 = pnand %p138, %p139
    %p141 = pneg %p140
    // Predicated region
    $region9: #{_lambda_.1} parent=5 // pred_check
      _
    $region10: #{_lambda_.1} parent=5 // pred_check_branch
      %143 = sbr.rel (%p140) target = $region12
    $region11: #{_lambda_.1} parent=5 // pred_region
      %s144 = ssub.s32 %s10, 1
      // Predicated region
      $region13: #{_lambda_.1} parent=11 // pred_check
        %p145 = pneg %p57
      $region14: #{_lambda_.1} parent=11 // pred_check_branch
        %147 = sbr.rel (%p145) target = $region16
      $region15: #{_lambda_.1} parent=11 // pred_region
        _
      $region16: #{_lambda_.1} parent=11 // pred_fallthru
        _
      // Predicated region
      $region17: #{_lambda_.1} parent=11 // pred_check
        %p148 = pneg %p104
      $region18: #{_lambda_.1} parent=11 // pred_check_branch
        %150 = sbr.rel (%p148) target = $region20
      $region19: #{_lambda_.1} parent=11 // pred_region
        _
      $region20: #{_lambda_.1} parent=11 // pred_fallthru
        _
    $region12: #{_lambda_.1} parent=5 // pred_fallthru
      _
    %p151 = scmp.lt.s32.totalorder %s10, 2
    // Predicated region
    $region21: #{_lambda_.1} parent=5 // pred_check
      %p152 = pneg %p151
    $region22: #{_lambda_.1} parent=5 // pred_check_branch
      %154 = sbr.rel (%p152) target = $region24
    $region23: #{_lambda_.1} parent=5 // pred_region
      // Predicated region
      $region25: #{_lambda_.1} parent=23 // pred_check
        %p155 = pneg %p30
      $region26: #{_lambda_.1} parent=23 // pred_check_branch
        %157 = sbr.rel (%p155) target = $region28
      $region27: #{_lambda_.1} parent=23 // pred_region
        %s158 = smul.u32 32, %s10
        %p159 = scmp.lt.s32.totalorder %s158, 63
        %s160 = scalar_select %p159, %s158, 63
        %s161 = smul.addr %s160, 4
        %s162 = scalar_lea.vmem %s0, %s161
        %s163 = smul.u32 32, %s10
      $region28: #{_lambda_.1} parent=23 // pred_fallthru
        _
      // Predicated region
      $region29: #{_lambda_.1} parent=23 // pred_check
        %p164 = pneg %p77
      $region30: #{_lambda_.1} parent=23 // pred_check_branch
        %166 = sbr.rel (%p164) target = $region32
      $region31: #{_lambda_.1} parent=23 // pred_region
        %s167 = smul.u32 32, %s10
        %p168 = scmp.lt.s32.totalorder %s167, 63
        %s169 = scalar_select %p168, %s167, 63
        %s170 = smul.addr %s169, 4
        %s171 = scalar_lea.vmem %s2, %s170
        %s172 = smul.u32 32, %s10
      $region32: #{_lambda_.1} parent=23 // pred_fallthru
        _
    $region24: #{_lambda_.1} parent=5 // pred_fallthru
      _
    %p173 = scmp.le.s32.totalorder 1, %s10
    %p174 = scmp.lt.s32.totalorder %s10, 3
    %p175 = pnand %p173, %p174
    %p176 = pneg %p175
    // Predicated region
    $region33: #{_lambda_.1} parent=5 // pred_check
      _
    $region34: #{_lambda_.1} parent=5 // pred_check_branch
      %178 = sbr.rel (%p175) target = $region36
    $region35: #{_lambda_.1} parent=5 // pred_region
      %s179 = ssub.s32 %s10, 1
      %s180 = smul.u32 32, %s15
      %p181 = scmp.lt.s32.totalorder %s180, 63
      %s182 = scalar_select %p181, %s180, 63
      %s183 = smul.addr %s182, 4
      %s184 = scalar_lea.vmem %s0, %s183
      %p185 = pneg %p36
      %p186 = pneg %p33
      %p187 = pneg %p57
      %p188 = pneg %p54
      %s189 = smul.u32 32, %s15
      %p190 = scmp.lt.s32.totalorder %s189, 63
      %s191 = scalar_select %p190, %s189, 63
      %s192 = smul.addr %s191, 4
      %s193 = scalar_lea.vmem %s2, %s192
      %p194 = pneg %p83
      %p195 = pneg %p80
      %p196 = pneg %p104
      %p197 = pneg %p101
      %p198 = pneg %p130
      %p199 = pneg %p127
      %s200 = smul.u32 32, %s15
      %p201 = scmp.lt.s32.totalorder %s200, 63
      %s202 = scalar_select %p201, %s200, 63
      %s203 = smul.addr %s202, 4
      %s204 = scalar_lea.vmem %s4, %s203
      %s205 = smul.u32 32, %s15
      %p206 = scmp.lt.s32.totalorder %s205, 63
      %s207 = scalar_select %p206, %s205, 63
      %s208 = smul.addr %s207, 4
      %s209 = scalar_lea.vmem %s0, %s208
      %s210 = smul.u32 32, %s15
      %s211 = smul.u32 32, %s15
      %p212 = scmp.lt.s32.totalorder %s211, 63
      %s213 = scalar_select %p212, %s211, 63
      %s214 = smul.addr %s213, 4
      %s215 = scalar_lea.vmem %s2, %s214
      %s216 = smul.u32 32, %s15
      %s217 = smul.u32 32, %s15
      %p218 = scmp.lt.s32.totalorder %s217, 63
      %s219 = scalar_select %p218, %s217, 63
      %s220 = smul.addr %s219, 4
      %s221 = scalar_lea.vmem %s4, %s220
      %s222 = smul.u32 32, %s15
      %v224 = vld [vmem:[%s209] sm:$0xf]
      %v225 = vld [vmem:[%s209 + $0x4] sm:$0xf]
      %v226 = vld [vmem:[%s209 + $0x8] sm:$0xf]
      %v227 = vld [vmem:[%s209 + $0xc] sm:$0xf]
      %v228 = vld [vmem:[%s209 + $0x10] sm:$0xf]
      %v229 = vld [vmem:[%s209 + $0x14] sm:$0xf]
      %v230 = vld [vmem:[%s209 + $0x18] sm:$0xf]
      %v231 = vld [vmem:[%s209 + $0x1c] sm:$0xf]
      %v232 = vld [vmem:[%s209 + $0x20] sm:$0xf]
      %v233 = vld [vmem:[%s209 + $0x24] sm:$0xf]
      %v234 = vld [vmem:[%s209 + $0x28] sm:$0xf]
      %v235 = vld [vmem:[%s209 + $0x2c] sm:$0xf]
      %v236 = vld [vmem:[%s209 + $0x30] sm:$0xf]
      %v237 = vld [vmem:[%s209 + $0x34] sm:$0xf]
      %v238 = vld [vmem:[%s209 + $0x38] sm:$0xf]
      %v239 = vld [vmem:[%s209 + $0x3c] sm:$0xf]
      %v240 = vld [vmem:[%s209 + $0x40] sm:$0xf]
      %v241 = vld [vmem:[%s209 + $0x44] sm:$0xf]
      %v242 = vld [vmem:[%s209 + $0x48] sm:$0xf]
      %v243 = vld [vmem:[%s209 + $0x4c] sm:$0xf]
      %v244 = vld [vmem:[%s209 + $0x50] sm:$0xf]
      %v245 = vld [vmem:[%s209 + $0x54] sm:$0xf]
      %v246 = vld [vmem:[%s209 + $0x58] sm:$0xf]
      %v247 = vld [vmem:[%s209 + $0x5c] sm:$0xf]
      %v248 = vld [vmem:[%s209 + $0x60] sm:$0xf]
      %v249 = vld [vmem:[%s209 + $0x64] sm:$0xf]
      %v250 = vld [vmem:[%s209 + $0x68] sm:$0xf]
      %v251 = vld [vmem:[%s209 + $0x6c] sm:$0xf]
      %v252 = vld [vmem:[%s209 + $0x70] sm:$0xf]
      %v253 = vld [vmem:[%s209 + $0x74] sm:$0xf]
      %v254 = vld [vmem:[%s209 + $0x78] sm:$0xf]
      %v255 = vld [vmem:[%s209 + $0x7c] sm:$0xf]
      %v256 = vld [vmem:[%s1] sm:$0xf]
      %v257 = vld [vmem:[%s1 + $0x4] sm:$0xf]
      %v258 = vld [vmem:[%s1 + $0x8] sm:$0xf]
      %v259 = vld [vmem:[%s1 + $0xc] sm:$0xf]
      %v260 = vld [vmem:[%s1 + $0x10] sm:$0xf]
      %v261 = vld [vmem:[%s1 + $0x14] sm:$0xf]
      %v262 = vld [vmem:[%s1 + $0x18] sm:$0xf]
      %v263 = vld [vmem:[%s1 + $0x1c] sm:$0xf]
      %v264 = vld [vmem:[%s215] sm:$0xf]
      %v265 = vld [vmem:[%s215 + $0x4] sm:$0xf]
      %v266 = vld [vmem:[%s215 + $0x8] sm:$0xf]
      %v267 = vld [vmem:[%s215 + $0xc] sm:$0xf]
      %v268 = vld [vmem:[%s215 + $0x10] sm:$0xf]
      %v269 = vld [vmem:[%s215 + $0x14] sm:$0xf]
      %v270 = vld [vmem:[%s215 + $0x18] sm:$0xf]
      %v271 = vld [vmem:[%s215 + $0x1c] sm:$0xf]
      %v272 = vld [vmem:[%s215 + $0x20] sm:$0xf]
      %v273 = vld [vmem:[%s215 + $0x24] sm:$0xf]
      %v274 = vld [vmem:[%s215 + $0x28] sm:$0xf]
      %v275 = vld [vmem:[%s215 + $0x2c] sm:$0xf]
      %v276 = vld [vmem:[%s215 + $0x30] sm:$0xf]
      %v277 = vld [vmem:[%s215 + $0x34] sm:$0xf]
      %v278 = vld [vmem:[%s215 + $0x38] sm:$0xf]
      %v279 = vld [vmem:[%s215 + $0x3c] sm:$0xf]
      %v280 = vld [vmem:[%s215 + $0x40] sm:$0xf]
      %v281 = vld [vmem:[%s215 + $0x44] sm:$0xf]
      %v282 = vld [vmem:[%s215 + $0x48] sm:$0xf]
      %v283 = vld [vmem:[%s215 + $0x4c] sm:$0xf]
      %v284 = vld [vmem:[%s215 + $0x50] sm:$0xf]
      %v285 = vld [vmem:[%s215 + $0x54] sm:$0xf]
      %v286 = vld [vmem:[%s215 + $0x58] sm:$0xf]
      %v287 = vld [vmem:[%s215 + $0x5c] sm:$0xf]
      %v288 = vld [vmem:[%s215 + $0x60] sm:$0xf]
      %v289 = vld [vmem:[%s215 + $0x64] sm:$0xf]
      %v290 = vld [vmem:[%s215 + $0x68] sm:$0xf]
      %v291 = vld [vmem:[%s215 + $0x6c] sm:$0xf]
      %v292 = vld [vmem:[%s215 + $0x70] sm:$0xf]
      %v293 = vld [vmem:[%s215 + $0x74] sm:$0xf]
      %v294 = vld [vmem:[%s215 + $0x78] sm:$0xf]
      %v295 = vld [vmem:[%s215 + $0x7c] sm:$0xf]
      %v296 = vunpack.c.l.bf16 %v264
      %v297 = vunpack.c.l.bf16 %v265
      %v298 = vunpack.c.l.bf16 %v266
      %v299 = vunpack.c.l.bf16 %v267
      %v300 = vunpack.c.l.bf16 %v268
      %v301 = vunpack.c.l.bf16 %v269
      %v302 = vunpack.c.l.bf16 %v270
      %v303 = vunpack.c.l.bf16 %v271
      %v304 = vunpack.c.l.bf16 %v272
      %v305 = vunpack.c.l.bf16 %v273
      %v306 = vunpack.c.l.bf16 %v274
      %v307 = vunpack.c.l.bf16 %v275
      %v308 = vunpack.c.l.bf16 %v276
      %v309 = vunpack.c.l.bf16 %v277
      %v310 = vunpack.c.l.bf16 %v278
      %v311 = vunpack.c.l.bf16 %v279
      %v312 = vunpack.c.l.bf16 %v280
      %v313 = vunpack.c.l.bf16 %v281
      %v314 = vunpack.c.l.bf16 %v282
      %v315 = vunpack.c.l.bf16 %v283
      %v316 = vunpack.c.l.bf16 %v284
      %v317 = vunpack.c.l.bf16 %v285
      %v318 = vunpack.c.l.bf16 %v286
      %v319 = vunpack.c.l.bf16 %v287
      %v320 = vunpack.c.l.bf16 %v288
      %v321 = vunpack.c.l.bf16 %v289
      %v322 = vunpack.c.l.bf16 %v290
      %v323 = vunpack.c.l.bf16 %v291
      %v324 = vunpack.c.l.bf16 %v292
      %v325 = vunpack.c.l.bf16 %v293
      %v326 = vunpack.c.l.bf16 %v294
      %v327 = vunpack.c.l.bf16 %v295
      %v360 = vunpack.c.l.b16 %v224
      %v361 = vunpack.c.l.b16 %v225
      %v362 = vunpack.c.l.b16 %v226
      %v363 = vunpack.c.l.b16 %v227
      %v364 = vunpack.c.l.b16 %v228
      %v365 = vunpack.c.l.b16 %v229
      %v366 = vunpack.c.l.b16 %v230
      %v367 = vunpack.c.l.b16 %v231
      %v368 = vunpack.c.l.b16 %v232
      %v369 = vunpack.c.l.b16 %v233
      %v370 = vunpack.c.l.b16 %v234
      %v371 = vunpack.c.l.b16 %v235
      %v372 = vunpack.c.l.b16 %v236
      %v373 = vunpack.c.l.b16 %v237
      %v374 = vunpack.c.l.b16 %v238
      %v375 = vunpack.c.l.b16 %v239
      %v376 = vunpack.c.l.b16 %v240
      %v377 = vunpack.c.l.b16 %v241
      %v378 = vunpack.c.l.b16 %v242
      %v379 = vunpack.c.l.b16 %v243
      %v380 = vunpack.c.l.b16 %v244
      %v381 = vunpack.c.l.b16 %v245
      %v382 = vunpack.c.l.b16 %v246
      %v383 = vunpack.c.l.b16 %v247
      %v384 = vunpack.c.l.b16 %v248
      %v385 = vunpack.c.l.b16 %v249
      %v386 = vunpack.c.l.b16 %v250
      %v387 = vunpack.c.l.b16 %v251
      %v388 = vunpack.c.l.b16 %v252
      %v389 = vunpack.c.l.b16 %v253
      %v390 = vunpack.c.l.b16 %v254
      %v391 = vunpack.c.l.b16 %v255
      %v392 = vpack.c.b16 %v361, %v360
      %v393 = vpack.c.b16 %v363, %v362
      %v394 = vpack.c.b16 %v365, %v364
      %v395 = vpack.c.b16 %v367, %v366
      %v396 = vpack.c.b16 %v369, %v368
      %v397 = vpack.c.b16 %v371, %v370
      %v398 = vpack.c.b16 %v373, %v372
      %v399 = vpack.c.b16 %v375, %v374
      %v400 = vpack.c.b16 %v377, %v376
      %v401 = vpack.c.b16 %v379, %v378
      %v402 = vpack.c.b16 %v381, %v380
      %v403 = vpack.c.b16 %v383, %v382
      %v404 = vpack.c.b16 %v385, %v384
      %v405 = vpack.c.b16 %v387, %v386
      %v406 = vpack.c.b16 %v389, %v388
      %v407 = vpack.c.b16 %v391, %v390
      %v416 = vunpack.c.l.b16 %v256
      %v417 = vunpack.c.l.b16 %v257
      %v418 = vunpack.c.l.b16 %v258
      %v419 = vunpack.c.l.b16 %v259
      %v420 = vunpack.c.l.b16 %v260
      %v421 = vunpack.c.l.b16 %v261
      %v422 = vunpack.c.l.b16 %v262
      %v423 = vunpack.c.l.b16 %v263
      %v424 = vpack.c.b16 %v417, %v416
      %v425 = vpack.c.b16 %v419, %v418
      %v426 = vpack.c.b16 %v421, %v420
      %v427 = vpack.c.b16 %v423, %v422
      %vm432 = vcmask 523264
      %v434 = vsel %vm432, %v392, 0
      %v437 = vsel %vm432, %v393, 0
      %v440 = vsel %vm432, %v394, 0
      %v443 = vsel %vm432, %v395, 0
      %v446 = vsel %vm432, %v396, 0
      %v449 = vsel %vm432, %v397, 0
      %v452 = vsel %vm432, %v398, 0
      %v455 = vsel %vm432, %v399, 0
      %v458 = vsel %vm432, %v400, 0
      %v461 = vsel %vm432, %v401, 0
      %v464 = vsel %vm432, %v402, 0
      %v467 = vsel %vm432, %v403, 0
      %v470 = vsel %vm432, %v404, 0
      %v473 = vsel %vm432, %v405, 0
      %v476 = vsel %vm432, %v406, 0
      %v479 = vsel %vm432, %v407, 0
      %481 = vmatprep.subr.bf16.mxu0 0
      %482 = vmatpush1.bf16.msra.mxu0 %v424
      %483 = vmatprep.subr.bf16.mxu0 0
      %484 = vmatpush1.bf16.msra.mxu0 %v425
      %485 = vmatprep.subr.bf16.mxu0 0
      %486 = vmatpush1.bf16.msra.mxu0 %v426
      %487 = vmatprep.subr.bf16.mxu0 0
      %488 = vmatpush1.bf16.msra.mxu0 %v427
      %489 = vmatprep.subr.bf16.mxu0 0
      %490 = vmatpush1.bf16.msra.mxu0 0
      %491 = vmatprep.subr.bf16.mxu0 0
      %492 = vmatpush1.bf16.msra.mxu0 0
      %493 = vmatprep.subr.bf16.mxu0 0
      %494 = vmatpush1.bf16.msra.mxu0 0
      %495 = vmatprep.subr.bf16.mxu0 0
      %496 = vmatpush1.bf16.msra.mxu0 0
      %497 = vmatprep.subr.bf16.mxu0 0
      %498 = vmatpush1.bf16.msra.mxu0 0
      %499 = vmatprep.subr.bf16.mxu0 0
      %500 = vmatpush1.bf16.msra.mxu0 0
      %501 = vmatprep.subr.bf16.mxu0 0
      %502 = vmatpush1.bf16.msra.mxu0 0
      %503 = vmatprep.subr.bf16.mxu0 0
      %504 = vmatpush1.bf16.msra.mxu0 0
      %505 = vmatprep.subr.bf16.mxu0 0
      %506 = vmatpush1.bf16.msra.mxu0 0
      %507 = vmatprep.subr.bf16.mxu0 0
      %508 = vmatpush1.bf16.msra.mxu0 0
      %509 = vmatprep.subr.bf16.mxu0 0
      %510 = vmatpush1.bf16.msra.mxu0 0
      %511 = vmatprep.subr.bf16.mxu0 0
      %512 = vmatpush1.bf16.msra.mxu0 0
      %513 = vmatprep.mubr.bf16.mxu0 0
      %514 = vmatmul.mubr.bf16.gmra.mrb[0].mxu0 %v434
      %v515 = vpop.f32.mrb[0].mxu0
      %v516 = vadd.f32 %v296, %v515
      %v517 = vpop.f32.mrb[0].mxu0
      %v518 = vpop.f32.mrb[0].mxu0
      %v519 = vadd.f32 %v297, %v518
      %v520 = vpop.f32.mrb[0].mxu0
      %521 = vmatprep.mubr.bf16.mxu0 0
      %522 = vmatmul.mubr.bf16.gmra.mrb[0].mxu0 %v437
      %v523 = vpop.f32.mrb[0].mxu0
      %v524 = vadd.f32 %v298, %v523
      %v525 = vpop.f32.mrb[0].mxu0
      %v526 = vpop.f32.mrb[0].mxu0
      %v527 = vadd.f32 %v299, %v526
      %v528 = vpop.f32.mrb[0].mxu0
      %529 = vmatprep.mubr.bf16.mxu0 0
      %530 = vmatmul.mubr.bf16.gmra.mrb[0].mxu0 %v440
      %v531 = vpop.f32.mrb[0].mxu0
      %v532 = vadd.f32 %v300, %v531
      %v533 = vpop.f32.mrb[0].mxu0
      %v534 = vpop.f32.mrb[0].mxu0
      %v535 = vadd.f32 %v301, %v534
      %v536 = vpop.f32.mrb[0].mxu0
      %537 = vmatprep.mubr.bf16.mxu0 0
      %538 = vmatmul.mubr.bf16.gmra.mrb[0].mxu0 %v443
      %v539 = vpop.f32.mrb[0].mxu0
      %v540 = vadd.f32 %v302, %v539
      %v541 = vpop.f32.mrb[0].mxu0
      %v542 = vpop.f32.mrb[0].mxu0
      %v543 = vadd.f32 %v303, %v542
      %v544 = vpop.f32.mrb[0].mxu0
      %545 = vmatprep.mubr.bf16.mxu0 0
      %546 = vmatmul.mubr.bf16.gmra.mrb[0].mxu0 %v446
      %v547 = vpop.f32.mrb[0].mxu0
      %v548 = vadd.f32 %v304, %v547
      %v549 = vpop.f32.mrb[0].mxu0
      %v550 = vpop.f32.mrb[0].mxu0
      %v551 = vadd.f32 %v305, %v550
      %v552 = vpop.f32.mrb[0].mxu0
      %553 = vmatprep.mubr.bf16.mxu0 0
      %554 = vmatmul.mubr.bf16.gmra.mrb[0].mxu0 %v449
      %v555 = vpop.f32.mrb[0].mxu0
      %v556 = vadd.f32 %v306, %v555
      %v557 = vpop.f32.mrb[0].mxu0
      %v558 = vpop.f32.mrb[0].mxu0
      %v559 = vadd.f32 %v307, %v558
      %v560 = vpop.f32.mrb[0].mxu0
      %561 = vmatprep.mubr.bf16.mxu0 0
      %562 = vmatmul.mubr.bf16.gmra.mrb[0].mxu0 %v452
      %v563 = vpop.f32.mrb[0].mxu0
      %v564 = vadd.f32 %v308, %v563
      %v565 = vpop.f32.mrb[0].mxu0
      %v566 = vpop.f32.mrb[0].mxu0
      %v567 = vadd.f32 %v309, %v566
      %v568 = vpop.f32.mrb[0].mxu0
      %569 = vmatprep.mubr.bf16.mxu0 0
      %570 = vmatmul.mubr.bf16.gmra.mrb[0].mxu0 %v455
      %v571 = vpop.f32.mrb[0].mxu0
      %v572 = vadd.f32 %v310, %v571
      %v573 = vpop.f32.mrb[0].mxu0
      %v574 = vpop.f32.mrb[0].mxu0
      %v575 = vadd.f32 %v311, %v574
      %v576 = vpop.f32.mrb[0].mxu0
      %577 = vmatprep.mubr.bf16.mxu0 0
      %578 = vmatmul.mubr.bf16.gmra.mrb[0].mxu0 %v458
      %v579 = vpop.f32.mrb[0].mxu0
      %v580 = vadd.f32 %v312, %v579
      %v581 = vpop.f32.mrb[0].mxu0
      %v582 = vpop.f32.mrb[0].mxu0
      %v583 = vadd.f32 %v313, %v582
      %v584 = vpop.f32.mrb[0].mxu0
      %585 = vmatprep.mubr.bf16.mxu0 0
      %586 = vmatmul.mubr.bf16.gmra.mrb[0].mxu0 %v461
      %v587 = vpop.f32.mrb[0].mxu0
      %v588 = vadd.f32 %v314, %v587
      %v589 = vpop.f32.mrb[0].mxu0
      %v590 = vpop.f32.mrb[0].mxu0
      %v591 = vadd.f32 %v315, %v590
      %v592 = vpop.f32.mrb[0].mxu0
      %593 = vmatprep.mubr.bf16.mxu0 0
      %594 = vmatmul.mubr.bf16.gmra.mrb[0].mxu0 %v464
      %v595 = vpop.f32.mrb[0].mxu0
      %v596 = vadd.f32 %v316, %v595
      %v597 = vpop.f32.mrb[0].mxu0
      %v598 = vpop.f32.mrb[0].mxu0
      %v599 = vadd.f32 %v317, %v598
      %v600 = vpop.f32.mrb[0].mxu0
      %601 = vmatprep.mubr.bf16.mxu0 0
      %602 = vmatmul.mubr.bf16.gmra.mrb[0].mxu0 %v467
      %v603 = vpop.f32.mrb[0].mxu0
      %v604 = vadd.f32 %v318, %v603
      %v605 = vpop.f32.mrb[0].mxu0
      %v606 = vpop.f32.mrb[0].mxu0
      %v607 = vadd.f32 %v319, %v606
      %v608 = vpop.f32.mrb[0].mxu0
      %609 = vmatprep.mubr.bf16.mxu0 0
      %610 = vmatmul.mubr.bf16.gmra.mrb[0].mxu0 %v470
      %v611 = vpop.f32.mrb[0].mxu0
      %v612 = vadd.f32 %v320, %v611
      %v613 = vpop.f32.mrb[0].mxu0
      %v614 = vpop.f32.mrb[0].mxu0
      %v615 = vadd.f32 %v321, %v614
      %v616 = vpop.f32.mrb[0].mxu0
      %617 = vmatprep.mubr.bf16.mxu0 0
      %618 = vmatmul.mubr.bf16.gmra.mrb[0].mxu0 %v473
      %v619 = vpop.f32.mrb[0].mxu0
      %v620 = vadd.f32 %v322, %v619
      %v621 = vpop.f32.mrb[0].mxu0
      %v622 = vpop.f32.mrb[0].mxu0
      %v623 = vadd.f32 %v323, %v622
      %v624 = vpop.f32.mrb[0].mxu0
      %625 = vmatprep.mubr.bf16.mxu0 0
      %626 = vmatmul.mubr.bf16.gmra.mrb[0].mxu0 %v476
      %v627 = vpop.f32.mrb[0].mxu0
      %v628 = vadd.f32 %v324, %v627
      %v629 = vpop.f32.mrb[0].mxu0
      %v630 = vpop.f32.mrb[0].mxu0
      %v631 = vadd.f32 %v325, %v630
      %v632 = vpop.f32.mrb[0].mxu0
      %633 = vmatprep.mubr.bf16.mxu0 0
      %634 = vmatmul.mubr.bf16.gmra.mrb[0].mxu0 %v479
      %v635 = vpop.f32.mrb[0].mxu0
      %v636 = vadd.f32 %v326, %v635
      %v637 = vpop.f32.mrb[0].mxu0
      %v638 = vpop.f32.mrb[0].mxu0
      %v639 = vadd.f32 %v327, %v638
      %v640 = vpop.f32.mrb[0].mxu0
      %641 = vdwg.mxu0
      %v642 = vld [vmem:[%s3] sm:$0x1]
      %v644 = vlaneseq
      %v645 = vshrl.u32 %v644, 7
      %v646 = vsub.s32 0, %v645
      %v647 = vrot.slane %v642, %v646
      %v649 = vadd.f32 %v516, %v647
      %v650 = vadd.f32 %v519, %v647
      %v651 = vadd.f32 %v524, %v647
      %v652 = vadd.f32 %v527, %v647
      %v653 = vadd.f32 %v532, %v647
      %v654 = vadd.f32 %v535, %v647
      %v655 = vadd.f32 %v540, %v647
      %v656 = vadd.f32 %v543, %v647
      %v657 = vadd.f32 %v548, %v647
      %v658 = vadd.f32 %v551, %v647
      %v659 = vadd.f32 %v556, %v647
      %v660 = vadd.f32 %v559, %v647
      %v661 = vadd.f32 %v564, %v647
      %v662 = vadd.f32 %v567, %v647
      %v663 = vadd.f32 %v572, %v647
      %v664 = vadd.f32 %v575, %v647
      %v665 = vadd.f32 %v580, %v647
      %v666 = vadd.f32 %v583, %v647
      %v667 = vadd.f32 %v588, %v647
      %v668 = vadd.f32 %v591, %v647
      %v669 = vadd.f32 %v596, %v647
      %v670 = vadd.f32 %v599, %v647
      %v671 = vadd.f32 %v604, %v647
      %v672 = vadd.f32 %v607, %v647
      %v673 = vadd.f32 %v612, %v647
      %v674 = vadd.f32 %v615, %v647
      %v675 = vadd.f32 %v620, %v647
      %v676 = vadd.f32 %v623, %v647
      %v677 = vadd.f32 %v628, %v647
      %v678 = vadd.f32 %v631, %v647
      %v679 = vadd.f32 %v636, %v647
      %v680 = vadd.f32 %v639, %v647
      %v681 = vmax.f32 %v649, 0.0
      %v682 = vmax.f32 %v650, 0.0
      %v683 = vmax.f32 %v651, 0.0
      %v684 = vmax.f32 %v652, 0.0
      %v685 = vmax.f32 %v653, 0.0
      %v686 = vmax.f32 %v654, 0.0
      %v687 = vmax.f32 %v655, 0.0
      %v688 = vmax.f32 %v656, 0.0
      %v689 = vmax.f32 %v657, 0.0
      %v690 = vmax.f32 %v658, 0.0
      %v691 = vmax.f32 %v659, 0.0
      %v692 = vmax.f32 %v660, 0.0
      %v693 = vmax.f32 %v661, 0.0
      %v694 = vmax.f32 %v662, 0.0
      %v695 = vmax.f32 %v663, 0.0
      %v696 = vmax.f32 %v664, 0.0
      %v697 = vmax.f32 %v665, 0.0
      %v698 = vmax.f32 %v666, 0.0
      %v699 = vmax.f32 %v667, 0.0
      %v700 = vmax.f32 %v668, 0.0
      %v701 = vmax.f32 %v669, 0.0
      %v702 = vmax.f32 %v670, 0.0
      %v703 = vmax.f32 %v671, 0.0
      %v704 = vmax.f32 %v672, 0.0
      %v705 = vmax.f32 %v673, 0.0
      %v706 = vmax.f32 %v674, 0.0
      %v707 = vmax.f32 %v675, 0.0
      %v708 = vmax.f32 %v676, 0.0
      %v709 = vmax.f32 %v677, 0.0
      %v710 = vmax.f32 %v678, 0.0
      %v711 = vmax.f32 %v679, 0.0
      %v712 = vmax.f32 %v680, 0.0
      %v713 = vpack.c.bf16 %v682, %v681
      %v714 = vpack.c.bf16 %v684, %v683
      %v715 = vpack.c.bf16 %v686, %v685
      %v716 = vpack.c.bf16 %v688, %v687
      %v717 = vpack.c.bf16 %v690, %v689
      %v718 = vpack.c.bf16 %v692, %v691
      %v719 = vpack.c.bf16 %v694, %v693
      %v720 = vpack.c.bf16 %v696, %v695
      %v721 = vpack.c.bf16 %v698, %v697
      %v722 = vpack.c.bf16 %v700, %v699
      %v723 = vpack.c.bf16 %v702, %v701
      %v724 = vpack.c.bf16 %v704, %v703
      %v725 = vpack.c.bf16 %v706, %v705
      %v726 = vpack.c.bf16 %v708, %v707
      %v727 = vpack.c.bf16 %v710, %v709
      %v728 = vpack.c.bf16 %v712, %v711
      %v745 = vunpack.c.l.b16 %v713
      %v746 = vunpack.c.h.b16 %v713
      %v747 = vunpack.c.l.b16 %v714
      %v748 = vunpack.c.h.b16 %v714
      %v749 = vunpack.c.l.b16 %v715
      %v750 = vunpack.c.h.b16 %v715
      %v751 = vunpack.c.l.b16 %v716
      %v752 = vunpack.c.h.b16 %v716
      %v753 = vunpack.c.l.b16 %v717
      %v754 = vunpack.c.h.b16 %v717
      %v755 = vunpack.c.l.b16 %v718
      %v756 = vunpack.c.h.b16 %v718
      %v757 = vunpack.c.l.b16 %v719
      %v758 = vunpack.c.h.b16 %v719
      %v759 = vunpack.c.l.b16 %v720
      %v760 = vunpack.c.h.b16 %v720
      %v761 = vunpack.c.l.b16 %v721
      %v762 = vunpack.c.h.b16 %v721
      %v763 = vunpack.c.l.b16 %v722
      %v764 = vunpack.c.h.b16 %v722
      %v765 = vunpack.c.l.b16 %v723
      %v766 = vunpack.c.h.b16 %v723
      %v767 = vunpack.c.l.b16 %v724
      %v768 = vunpack.c.h.b16 %v724
      %v769 = vunpack.c.l.b16 %v725
      %v770 = vunpack.c.h.b16 %v725
      %v771 = vunpack.c.l.b16 %v726
      %v772 = vunpack.c.h.b16 %v726
      %v773 = vunpack.c.l.b16 %v727
      %v774 = vunpack.c.h.b16 %v727
      %v775 = vunpack.c.l.b16 %v728
      %v776 = vunpack.c.h.b16 %v728
      %v777 = vpack.c.b16 %v745, %v745
      %v778 = vpack.c.b16 %v746, %v746
      %v779 = vpack.c.b16 %v747, %v747
      %v780 = vpack.c.b16 %v748, %v748
      %v781 = vpack.c.b16 %v749, %v749
      %v782 = vpack.c.b16 %v750, %v750
      %v783 = vpack.c.b16 %v751, %v751
      %v784 = vpack.c.b16 %v752, %v752
      %v785 = vpack.c.b16 %v753, %v753
      %v786 = vpack.c.b16 %v754, %v754
      %v787 = vpack.c.b16 %v755, %v755
      %v788 = vpack.c.b16 %v756, %v756
      %v789 = vpack.c.b16 %v757, %v757
      %v790 = vpack.c.b16 %v758, %v758
      %v791 = vpack.c.b16 %v759, %v759
      %v792 = vpack.c.b16 %v760, %v760
      %v793 = vpack.c.b16 %v761, %v761
      %v794 = vpack.c.b16 %v762, %v762
      %v795 = vpack.c.b16 %v763, %v763
      %v796 = vpack.c.b16 %v764, %v764
      %v797 = vpack.c.b16 %v765, %v765
      %v798 = vpack.c.b16 %v766, %v766
      %v799 = vpack.c.b16 %v767, %v767
      %v800 = vpack.c.b16 %v768, %v768
      %v801 = vpack.c.b16 %v769, %v769
      %v802 = vpack.c.b16 %v770, %v770
      %v803 = vpack.c.b16 %v771, %v771
      %v804 = vpack.c.b16 %v772, %v772
      %v805 = vpack.c.b16 %v773, %v773
      %v806 = vpack.c.b16 %v774, %v774
      %v807 = vpack.c.b16 %v775, %v775
      %v808 = vpack.c.b16 %v776, %v776
      %841 = vst [vmem:[%s221] sm:$0xf] %v777
      %842 = vst [vmem:[%s221 + $0x4] sm:$0xf] %v778
      %843 = vst [vmem:[%s221 + $0x8] sm:$0xf] %v779
      %844 = vst [vmem:[%s221 + $0xc] sm:$0xf] %v780
      %845 = vst [vmem:[%s221 + $0x10] sm:$0xf] %v781
      %846 = vst [vmem:[%s221 + $0x14] sm:$0xf] %v782
      %847 = vst [vmem:[%s221 + $0x18] sm:$0xf] %v783
      %848 = vst [vmem:[%s221 + $0x1c] sm:$0xf] %v784
      %849 = vst [vmem:[%s221 + $0x20] sm:$0xf] %v785
      %850 = vst [vmem:[%s221 + $0x24] sm:$0xf] %v786
      %851 = vst [vmem:[%s221 + $0x28] sm:$0xf] %v787
      %852 = vst [vmem:[%s221 + $0x2c] sm:$0xf] %v788
      %853 = vst [vmem:[%s221 + $0x30] sm:$0xf] %v789
      %854 = vst [vmem:[%s221 + $0x34] sm:$0xf] %v790
      %855 = vst [vmem:[%s221 + $0x38] sm:$0xf] %v791
      %856 = vst [vmem:[%s221 + $0x3c] sm:$0xf] %v792
      %857 = vst [vmem:[%s221 + $0x40] sm:$0xf] %v793
      %858 = vst [vmem:[%s221 + $0x44] sm:$0xf] %v794
      %859 = vst [vmem:[%s221 + $0x48] sm:$0xf] %v795
      %860 = vst [vmem:[%s221 + $0x4c] sm:$0xf] %v796
      %861 = vst [vmem:[%s221 + $0x50] sm:$0xf] %v797
      %862 = vst [vmem:[%s221 + $0x54] sm:$0xf] %v798
      %863 = vst [vmem:[%s221 + $0x58] sm:$0xf] %v799
      %864 = vst [vmem:[%s221 + $0x5c] sm:$0xf] %v800
      %865 = vst [vmem:[%s221 + $0x60] sm:$0xf] %v801
      %866 = vst [vmem:[%s221 + $0x64] sm:$0xf] %v802
      %867 = vst [vmem:[%s221 + $0x68] sm:$0xf] %v803
      %868 = vst [vmem:[%s221 + $0x6c] sm:$0xf] %v804
      %869 = vst [vmem:[%s221 + $0x70] sm:$0xf] %v805
      %870 = vst [vmem:[%s221 + $0x74] sm:$0xf] %v806
      %871 = vst [vmem:[%s221 + $0x78] sm:$0xf] %v807
      %872 = vst [vmem:[%s221 + $0x7c] sm:$0xf] %v808
      %s873 = smul.u32 32, %s15
      %p874 = scmp.lt.s32.totalorder %s873, 63
      %s875 = scalar_select %p874, %s873, 63
      %s876 = smul.addr %s875, 4
      %s877 = scalar_lea.vmem %s4, %s876
      // Predicated region
      $region37: #{_lambda_.1} parent=35 // pred_check
        %p878 = pneg %p127
      $region38: #{_lambda_.1} parent=35 // pred_check_branch
        %880 = sbr.rel (%p878) target = $region40
      $region39: #{_lambda_.1} parent=35 // pred_region
        %s881 = smul.u32 32, %s15
      $region40: #{_lambda_.1} parent=35 // pred_fallthru
        _
    $region36: #{_lambda_.1} parent=5 // pred_fallthru
      _
    %p882 = scmp.le.s32.totalorder 2, %s10
    // Predicated region
    $region41: #{_lambda_.1} parent=5 // pred_check
      %p883 = pneg %p882
    $region42: #{_lambda_.1} parent=5 // pred_check_branch
      %885 = sbr.rel (%p883) target = $region44
    $region43: #{_lambda_.1} parent=5 // pred_region
      %s886 = ssub.s32 %s10, 2
      // Predicated region
      $region45: #{_lambda_.1} parent=43 // pred_check
        %p887 = pneg %p133
      $region46: #{_lambda_.1} parent=43 // pred_check_branch
        %889 = sbr.rel (%p887) target = $region48
      $region47: #{_lambda_.1} parent=43 // pred_region
        %s890 = smul.u32 32, %s16
        %p891 = scmp.lt.s32.totalorder %s890, 63
        %s892 = scalar_select %p891, %s890, 63
        %s893 = smul.addr %s892, 4
        %s894 = scalar_lea.vmem %s4, %s893
      $region48: #{_lambda_.1} parent=43 // pred_fallthru
        _
    $region44: #{_lambda_.1} parent=5 // pred_fallthru
      _
  $region6: #{_lambda_.1} parent=0 // loop_footer
    %s14 = sadd.s32 1, %s10
  $region7: #{_lambda_.1} parent=0 // loop_footer_branch
    %9 = sbr.rel target = $region3
  $region8: #{_lambda_.1} parent=0 // loop_exit
    _

</llo_original>
